<compile_context>
chip_gen: v7x
topology: tpu7x:2x2x1
jax: 0.10.0
libtpu: 0.0.40
codegen_flags: <defaults>
</compile_context>

<pallas_src>
import jax
import jax.numpy as jnp
import numpy as np
from jax.experimental import pallas as pl
from jax.experimental.pallas import tpu as pltpu


def _round_up(x, m):
    return ((x + m - 1) // m) * m


def _vmem_capacity_bytes():
    """Physical VMEM capacity of the local chip (fallback: v7x's 64 MiB)."""
    try:
        cap = int(getattr(pltpu.get_tpu_info(), "vmem_capacity_bytes", 0))
        if cap > 0:
            return cap
    except Exception:
        pass
    return 64 * 1024 * 1024


def _choose_block_b(batch, emb, itemsize, budget_bytes):
    """Batch tile (lane axis): multiple of 128, VMEM-budgeted, >=2 grid steps if possible."""
    sublane = 8 * (4 // itemsize)                 # 8 for f32, 16 for bf16
    e_sub = _round_up(emb, sublane)               # sublane padding of the E axis
    # 3 double-buffered input tiles + double-buffered (1, bt) f32 output tile
    bytes_per_col = 2 * 3 * e_sub * itemsize + 2 * 8 * 4
    bt = (budget_bytes // bytes_per_col) // 128 * 128
    bt = max(128, min(bt, 8192))
    b128 = _round_up(batch, 128)
    bt = min(bt, b128)
    # v7x megacore: give the "parallel" grid axis at least 2 steps when possible.
    if b128 >= 256:
        bt = min(bt, _round_up(b128 // 2, 128))
    return bt


def _skipgram_neg_kernel(c_ref, o_ref, n_ref, out_ref):
    """One batch tile (lane axis). Inputs are (E, bt); output is per-row loss (1, bt)."""
    c = c_ref[...].astype(jnp.float32)                       # (E, bt)
    o = o_ref[...].astype(jnp.float32)                       # (E, bt)
    n = n_ref[...].astype(jnp.float32)                       # (E, bt)  == sum_k n_k

    # Dot products reduce over E (sublane axis) -> lane-dense (1, bt) rows.
    uovc = jnp.sum(o * c, axis=0, keepdims=True)             # (1, bt)
    ukvc_sum = -jnp.sum(n * c, axis=0, keepdims=True)        # (1, bt)

    # Numerically stable log-sigmoid: log sigma(x) = min(x, 0) - log1p(exp(-|x|))
    def log_sigmoid(x):
        return jnp.minimum(x, 0.0) - jnp.log1p(jnp.exp(-jnp.abs(x)))

    out_ref[...] = (log_sigmoid(uovc) + log_sigmoid(ukvc_sum)).astype(out_ref.dtype)


def skipgram_neg_loss(center, outside, negative, emb_center_w, emb_outside_w,
                      *, block_b=None, stream_dtype=None):
    """Forward pass of SkipgramNeg.

    center:   (B, 1) int32 indices
    outside:  (B, 1) int32 indices
    negative: (B, K) int32 indices
    emb_*_w:  (voc_size, E) float embedding tables
    stream_dtype: dtype streamed through the kernel (None -> table dtype).
    returns:  scalar float32 loss = -mean_b[log sigma(uovc) + log sigma(ukvc_sum)]
    """
    B = center.shape[0]
    K = negative.shape[1]
    E = emb_center_w.shape[1]

    stream_dtype = emb_center_w.dtype if stream_dtype is None else jnp.dtype(stream_dtype)
    itemsize = jnp.dtype(stream_dtype).itemsize

    # ---- generation-aware VMEM budgeting (v5e/v6e: 128 MiB, v7x: 64 MiB) ----
    vmem_cap = _vmem_capacity_bytes()
    tile_budget = int(0.4 * vmem_cap)
    vmem_limit = min(int(0.75 * vmem_cap), 100 * 1024 * 1024)

    if block_b is None:
        bt = _choose_block_b(B, E, itemsize, tile_budget)
    else:
        bt = max(128, _round_up(int(block_b), 128))
        bt = min(bt, _round_up(B, 128))
    bp = _round_up(B, bt)
    num_blocks = bp // bt
    pad = bp - B

    # ---- embedding lookups + K-sum stay in XLA (glue). Padded rows reuse index 0. ----
    c_idx = jnp.pad(center[:, 0], (0, pad))
    o_idx = jnp.pad(outside[:, 0], (0, pad))
    n_idx = jnp.pad(negative, ((0, pad), (0, 0)))

    c_emb = jnp.take(emb_center_w, c_idx, axis=0)                              # (Bp, E)
    o_emb = jnp.take(emb_outside_w, o_idx, axis=0)                             # (Bp, E)
    # Pre-sum negatives over K (f32 accumulation); XLA fuses gather + reduce so
    # the (Bp, K, E) intermediate is never needed by the kernel.
    n_sum = jnp.take(emb_outside_w, n_idx.reshape(-1), axis=0).astype(jnp.float32)
    n_sum = n_sum.reshape(bp, K, E).sum(axis=1)                                # (Bp, E)

    # Transpose to (E, Bp): batch on the lane axis -> lane-dense tiles/stores.
    c_t = c_emb.T.astype(stream_dtype)                                         # (E, Bp)
    o_t = o_emb.T.astype(stream_dtype)                                         # (E, Bp)
    n_t = n_sum.T.astype(stream_dtype)                                         # (E, Bp)

    cost = pl.CostEstimate(
        flops=4 * B * E,                      # two length-E dot products per row
        transcendentals=4 * B,                # two exp + two log1p per row
        bytes_accessed=3 * bp * E * itemsize + bp * 4,
    )

    # TODO(synk): if per-step DMA ends up tiny (small E, bf16), consider
    # pipeline_mode=pl.Buffered(3) on the inputs to keep issue latency hidden.
    loss_rows = pl.pallas_call(
        _skipgram_neg_kernel,
        out_shape=jax.ShapeDtypeStruct((1, bp), jnp.float32),
        grid_spec=pltpu.PrefetchScalarGridSpec(
            num_scalar_prefetch=0,
            grid=(num_blocks,),
            in_specs=[
                pl.BlockSpec((E, bt), lambda i: (0, i)),
                pl.BlockSpec((E, bt), lambda i: (0, i)),
                pl.BlockSpec((E, bt), lambda i: (0, i)),
            ],
            out_specs=pl.BlockSpec((1, bt), lambda i: (0, i)),
        ),
        compiler_params=pltpu.CompilerParams(
            dimension_semantics=("parallel",),
            vmem_limit_bytes=vmem_limit,
        ),
        cost_estimate=cost,
    )(c_t, o_t, n_t)

    # Drop padded rows; single mean over the true batch (matches torch.mean).
    return -jnp.mean(loss_rows[0, :B])


def _reference_loss(center, outside, negative, emb_center_w, emb_outside_w):
    """Pure-JAX reference mirroring the PyTorch forward (f32)."""
    B, K = negative.shape
    E = emb_center_w.shape[1]
    c = jnp.take(emb_center_w, center[:, 0], axis=0)                           # (B, E)
    o = jnp.take(emb_outside_w, outside[:, 0], axis=0)                         # (B, E)
    n = jnp.take(emb_outside_w, negative.reshape(-1), axis=0).reshape(B, K, E)
    uovc = jnp.sum(o * c, axis=-1, keepdims=True)                              # (B, 1)
    ukvc = -jnp.sum(n * c[:, None, :], axis=-1)                                # (B, K)
    ukvc_sum = jnp.sum(ukvc, axis=1, keepdims=True)                            # (B, 1)
    loss = jax.nn.log_sigmoid(uovc) + jax.nn.log_sigmoid(ukvc_sum)
    return -jnp.mean(loss)


if __name__ == "__main__":
    key = jax.random.PRNGKey(0)
    voc_size, emb_size = 100, 32
    B, K = 4, 5

    k1, k2, k3, k4, k5 = jax.random.split(key, 5)
    # Deterministic parameter init (nn.Embedding default: N(0, 1)).
    emb_center_w = jax.random.normal(k1, (voc_size, emb_size), dtype=jnp.float32)
    emb_outside_w = jax.random.normal(k2, (voc_size, emb_size), dtype=jnp.float32)

    center = jax.random.randint(k3, (B, 1), 0, voc_size, dtype=jnp.int32)
    outside = jax.random.randint(k4, (B, 1), 0, voc_size, dtype=jnp.int32)
    negative = jax.random.randint(k5, (B, K), 0, voc_size, dtype=jnp.int32)

    # 1) f32 streaming, auto tile -> tight tolerance.
    loss = skipgram_neg_loss(center, outside, negative, emb_center_w, emb_outside_w)
    jax.block_until_ready(loss)
    ref = _reference_loss(center, outside, negative, emb_center_w, emb_outside_w)
    np.testing.assert_allclose(np.asarray(loss), np.asarray(ref), rtol=1e-5, atol=1e-5)

    # 2) Larger, padded batch; multi-block grid; bf16 streaming (looser tolerance).
    B2 = 300
    k6, k7, k8 = jax.random.split(k5, 3)
    center2 = jax.random.randint(k6, (B2, 1), 0, voc_size, dtype=jnp.int32)
    outside2 = jax.random.randint(k7, (B2, 1), 0, voc_size, dtype=jnp.int32)
    negative2 = jax.random.randint(k8, (B2, K), 0, voc_size, dtype=jnp.int32)
    ref2 = _reference_loss(center2, outside2, negative2, emb_center_w, emb_outside_w)

    loss2 = skipgram_neg_loss(center2, outside2, negative2, emb_center_w, emb_outside_w,
                              block_b=128, stream_dtype=jnp.bfloat16)
    jax.block_until_ready(loss2)
    np.testing.assert_allclose(np.asarray(loss2), np.asarray(ref2), rtol=5e-2, atol=5e-2)

    # 3) Same batch with f32 streaming and the auto-picked multi-block tile.
    loss3 = skipgram_neg_loss(center2, outside2, negative2, emb_center_w, emb_outside_w)
    jax.block_until_ready(loss3)
    np.testing.assert_allclose(np.asarray(loss3), np.asarray(ref2), rtol=1e-5, atol=1e-5)

    print("KERNEL_OK")
</pallas_src>

<mosaic_0001>
module attributes {stable_mosaic.version = 11 : i64} {
  func.func @_skipgram_neg_kernel(%arg0: i32, %arg1: memref<32x128xf32, #tpu.memory_space<vmem>>, %arg2: memref<32x128xf32, #tpu.memory_space<vmem>>, %arg3: memref<32x128xf32, #tpu.memory_space<vmem>>, %arg4: memref<1x128xf32, #tpu.memory_space<vmem>>) attributes {dimension_semantics = [#tpu.dimension_semantics<parallel>], iteration_bounds = array<i64: 1>, scalar_prefetch = 0 : i64, scratch_operands = 0 : i64, tpu.core_type = #tpu.core_type<tc>, window_params = [{transform_indices = @transform_0, window_bounds = array<i64: 32, 128>}, {transform_indices = @transform_1, window_bounds = array<i64: 32, 128>}, {transform_indices = @transform_2, window_bounds = array<i64: 32, 128>}, {transform_indices = @transform_3, window_bounds = array<i64: 1, 128>}]} {
    %c0 = arith.constant 0 : index
    %c0_0 = arith.constant 0 : index
    %0 = vector.load %arg1[%c0, %c0_0] : memref<32x128xf32, #tpu.memory_space<vmem>>, vector<32x128xf32>
    %c0_1 = arith.constant 0 : index
    %c0_2 = arith.constant 0 : index
    %1 = vector.load %arg2[%c0_1, %c0_2] : memref<32x128xf32, #tpu.memory_space<vmem>>, vector<32x128xf32>
    %c0_3 = arith.constant 0 : index
    %c0_4 = arith.constant 0 : index
    %2 = vector.load %arg3[%c0_3, %c0_4] : memref<32x128xf32, #tpu.memory_space<vmem>>, vector<32x128xf32>
    %3 = arith.mulf %1, %0 : vector<32x128xf32>
    %cst = arith.constant dense<0.000000e+00> : vector<128xf32>
    %4 = vector.multi_reduction <add>, %3, %cst [0] : vector<32x128xf32> to vector<128xf32>
    %5 = vector.shape_cast %4 : vector<128xf32> to vector<1x128xf32>
    %6 = arith.mulf %2, %0 : vector<32x128xf32>
    %cst_5 = arith.constant dense<0.000000e+00> : vector<128xf32>
    %7 = vector.multi_reduction <add>, %6, %cst_5 [0] : vector<32x128xf32> to vector<128xf32>
    %8 = vector.shape_cast %7 : vector<128xf32> to vector<1x128xf32>
    %cst_6 = arith.constant 0.000000e+00 : f32
    %9 = vector.broadcast %cst_6 : f32 to vector<1x128xf32>
    %10 = arith.subf %9, %8 : vector<1x128xf32>
    %cst_7 = arith.constant 0.000000e+00 : f32
    %11 = vector.broadcast %cst_7 : f32 to vector<1x128xf32>
    %12 = arith.minimumf %5, %11 : vector<1x128xf32>
    %13 = math.absf %5 : vector<1x128xf32>
    %cst_8 = arith.constant 0.000000e+00 : f32
    %14 = vector.broadcast %cst_8 : f32 to vector<1x128xf32>
    %15 = arith.subf %14, %13 : vector<1x128xf32>
    %16 = math.exp %15 : vector<1x128xf32>
    %17 = math.log1p %16 : vector<1x128xf32>
    %18 = arith.subf %12, %17 : vector<1x128xf32>
    %cst_9 = arith.constant 0.000000e+00 : f32
    %19 = vector.broadcast %cst_9 : f32 to vector<1x128xf32>
    %20 = arith.minimumf %10, %19 : vector<1x128xf32>
    %21 = math.absf %10 : vector<1x128xf32>
    %cst_10 = arith.constant 0.000000e+00 : f32
    %22 = vector.broadcast %cst_10 : f32 to vector<1x128xf32>
    %23 = arith.subf %22, %21 : vector<1x128xf32>
    %24 = math.exp %23 : vector<1x128xf32>
    %25 = math.log1p %24 : vector<1x128xf32>
    %26 = arith.subf %20, %25 : vector<1x128xf32>
    %27 = arith.addf %18, %26 : vector<1x128xf32>
    %c0_11 = arith.constant 0 : index
    %c0_12 = arith.constant 0 : index
    %28 = vector.load %arg4[%c0_11, %c0_12] : memref<1x128xf32, #tpu.memory_space<vmem>>, vector<1x128xf32>
    tpu.vector_store %arg4[%c0_11, %c0_12], %27 {strides = array<i32>} : memref<1x128xf32, #tpu.memory_space<vmem>>, vector<1x128xf32>,
    return
  }
  func.func @transform_0(%arg0: i32) -> (i32, i32) {
    %c0_i32 = arith.constant 0 : i32
    %c0_i32_0 = arith.constant 0 : i32
    return %c0_i32, %arg0 : i32, i32
  }
  func.func @transform_1(%arg0: i32) -> (i32, i32) {
    %c0_i32 = arith.constant 0 : i32
    %c0_i32_0 = arith.constant 0 : i32
    return %c0_i32, %arg0 : i32, i32
  }
  func.func @transform_2(%arg0: i32) -> (i32, i32) {
    %c0_i32 = arith.constant 0 : i32
    %c0_i32_0 = arith.constant 0 : i32
    return %c0_i32, %arg0 : i32, i32
  }
  func.func @transform_3(%arg0: i32) -> (i32, i32) {
    %c0_i32 = arith.constant 0 : i32
    %c0_i32_0 = arith.constant 0 : i32
    return %c0_i32, %arg0 : i32, i32
  }
}

</mosaic_0001>

<llo_original>
// kernel: tpu_custom_call.1
$region0: #{tpu_custom_call.1}
  #allocation0 [shape = 'u32[]', space=smem, size = 0x4, offset = 0x4, fixed_abs, tag = 'smem constant byte address 0x4 - core index']
  #allocation1 [shape = 'u32[144,128]{1,0:T(1,128)}', space=vmem, size = 0x12000, scoped, tag = 'internal scratch']
  %s0 = inlined_call_operand.hbm [shape: f32[32,128], index: 0, kind: input, shape index: {}]
  %s1 = inlined_call_operand.hbm [shape: f32[32,128], index: 1, kind: input, shape index: {}]
  %s2 = inlined_call_operand.hbm [shape: f32[32,128], index: 2, kind: input, shape index: {}]
  %s3 = inlined_call_operand.hbm [shape: f32[1,128], index: 3, kind: output, shape index: {}]
  %s4 = sld [smem:[#allocation0]]
  $region34: #{tpu_custom_call.1} parent=0
    _
  %s6 = ssub.s32 1, %s4
  %s7 = scalar_select 0, %s6, %s4
  $region1: #{tpu_custom_call.1} parent=0
    #allocation2 [shape = 'u8[16384]{0}', space=vmem, size = 0x4000, scoped, tag = 'input window, operand 0, single buffered']
    #allocation3 [shape = 's32[1]{0}', space=sflag, size = 0x4, scoped, tag = 'scoped memory for tpu_custom_call.1']
    #allocation4 [shape = 's32[1]{0}', space=sflag, size = 0x4, scoped, tag = 'scoped memory for tpu_custom_call.1']
    #allocation5 [shape = 'u8[16384]{0}', space=vmem, size = 0x4000, scoped, tag = 'input window, operand 1, single buffered']
    #allocation6 [shape = 's32[1]{0}', space=sflag, size = 0x4, scoped, tag = 'scoped memory for tpu_custom_call.1']
    #allocation7 [shape = 'u8[16384]{0}', space=vmem, size = 0x4000, scoped, tag = 'input window, operand 2, single buffered']
    #allocation8 [shape = 'u8[512]{0}', space=vmem, size = 0x400, scoped, tag = 'output window, operand 0, single buffered']
    %8 = vsyncpa [#allocation3], 0
    %9 = vsyncpa [#allocation6], 0
    %10 = vsyncpa [#allocation4], 0
    // Predicated region
    $region2: #{tpu_custom_call.1} parent=1 // pred_check
      _
    $region3: #{tpu_custom_call.1} parent=1 // pred_check_branch
      %12 = sbr.rel (0) target = $region5
    $region4: #{tpu_custom_call.1} parent=1 // pred_region
      %s14 = ssub.s32 512, 512
      %15 = vsyncadd [#allocation3], %s14
      %s16 = sshll.u32 [#allocation2], 4
      %s17 = int_to_ptr.vmem [resolvable:$true] %s16
      %22 = dma.hbm_to_vmem [thread:$0]  %s0, 512, %s17, [#allocation3], 128, 128, 8
    $region5: #{tpu_custom_call.1} parent=1 // pred_fallthru
      _
    // Predicated region
    $region6: #{tpu_custom_call.1} parent=1 // pred_check
      _
    $region7: #{tpu_custom_call.1} parent=1 // pred_check_branch
      %24 = sbr.rel (0) target = $region9
    $region8: #{tpu_custom_call.1} parent=1 // pred_region
      %s26 = ssub.s32 512, 512
      %27 = vsyncadd [#allocation6], %s26
      %s28 = sshll.u32 [#allocation5], 4
      %s29 = int_to_ptr.vmem [resolvable:$true] %s28
      %34 = dma.hbm_to_vmem [thread:$0]  %s1, 512, %s29, [#allocation6], 128, 128, 8
    $region9: #{tpu_custom_call.1} parent=1 // pred_fallthru
      _
    // Predicated region
    $region10: #{tpu_custom_call.1} parent=1 // pred_check
      _
    $region11: #{tpu_custom_call.1} parent=1 // pred_check_branch
      %36 = sbr.rel (0) target = $region13
    $region12: #{tpu_custom_call.1} parent=1 // pred_region
      %s38 = ssub.s32 512, 512
      %39 = vsyncadd [#allocation6], %s38
      %s40 = sshll.u32 [#allocation7], 4
      %s41 = int_to_ptr.vmem [resolvable:$true] %s40
      %46 = dma.hbm_to_vmem [thread:$0]  %s2, 512, %s41, [#allocation6], 128, 128, 8
    $region13: #{tpu_custom_call.1} parent=1 // pred_fallthru
      _
    // Predicated region
    $region14: #{tpu_custom_call.1} parent=1 // pred_check
      _
    $region15: #{tpu_custom_call.1} parent=1 // pred_check_branch
      %48 = sbr.rel (0) target = $region17
    $region16: #{tpu_custom_call.1} parent=1 // pred_region
      %49 = dma.done [#allocation3], 512
    $region17: #{tpu_custom_call.1} parent=1 // pred_fallthru
      _
    // Predicated region
    $region18: #{tpu_custom_call.1} parent=1 // pred_check
      _
    $region19: #{tpu_custom_call.1} parent=1 // pred_check_branch
      %51 = sbr.rel (0) target = $region21
    $region20: #{tpu_custom_call.1} parent=1 // pred_region
      %52 = dma.done [#allocation6], 512
    $region21: #{tpu_custom_call.1} parent=1 // pred_fallthru
      _
    // Predicated region
    $region22: #{tpu_custom_call.1} parent=1 // pred_check
      _
    $region23: #{tpu_custom_call.1} parent=1 // pred_check_branch
      %54 = sbr.rel (0) target = $region25
    $region24: #{tpu_custom_call.1} parent=1 // pred_region
      %55 = dma.done [#allocation6], 512
    $region25: #{tpu_custom_call.1} parent=1 // pred_fallthru
      _
    %v56 = vld [vmem:[#allocation2] sm:$0xff]
    %v57 = vld [vmem:[#allocation2 + $0x8] sm:$0xff]
    %v58 = vld [vmem:[#allocation2 + $0x10] sm:$0xff]
    %v59 = vld [vmem:[#allocation2 + $0x18] sm:$0xff]
    %v60 = vld [vmem:[#allocation5] sm:$0xff]
    %v61 = vld [vmem:[#allocation5 + $0x8] sm:$0xff]
    %v62 = vld [vmem:[#allocation5 + $0x10] sm:$0xff]
    %v63 = vld [vmem:[#allocation5 + $0x18] sm:$0xff]
    %v64 = vld [vmem:[#allocation7] sm:$0xff]
    %v65 = vld [vmem:[#allocation7 + $0x8] sm:$0xff]
    %v66 = vld [vmem:[#allocation7 + $0x10] sm:$0xff]
    %v67 = vld [vmem:[#allocation7 + $0x18] sm:$0xff]
    %v68 = vmul.f32 %v60, %v56
    %v69 = vmul.f32 %v61, %v57
    %v70 = vmul.f32 %v62, %v58
    %v71 = vmul.f32 %v63, %v59
    %v72 = vadd.f32 %v68, %v69
    %v73 = vadd.f32 %v72, %v70
    %v74 = vadd.f32 %v73, %v71
    %v75 = vrot.slane %v74, 4
    %v76 = vadd.f32 %v74, %v75
    %v77 = vrot.slane %v76, 2
    %v78 = vadd.f32 %v76, %v77
    %v79 = vrot.slane %v78, 1
    %v80 = vadd.f32 %v78, %v79
    %v81 = vmul.f32 %v64, %v56
    %v82 = vmul.f32 %v65, %v57
    %v83 = vmul.f32 %v66, %v58
    %v84 = vmul.f32 %v67, %v59
    %v85 = vadd.f32 %v81, %v82
    %v86 = vadd.f32 %v85, %v83
    %v87 = vadd.f32 %v86, %v84
    %v88 = vrot.slane %v87, 4
    %v89 = vadd.f32 %v87, %v88
    %v90 = vrot.slane %v89, 2
    %v91 = vadd.f32 %v89, %v90
    %v92 = vrot.slane %v91, 1
    %v93 = vadd.f32 %v91, %v92
    %v94 = vsub.f32 0.0, %v93
    %v95 = vmin.f32 %v80, 0.0
    %v96 = vand.u32 2147483647, %v80
    %v97 = vsub.f32 0.0, %v96
    %v98 = vmul.f32 %v97, 1.442695
    %v99 = vpow.pop %v98
    %v100 = vadd.f32 %v99, 1.0
    %v101 = vlog2.pop %v100
    %v102 = vmul.f32 %v101, 0.6931472
    %v103 = vmul.f32 -0.5, %v99
    %v104 = vadd.f32 %v103, 1.0
    %v105 = vmul.f32 %v104, %v99
    %v106 = vand.u32 2147483647, %v99
    %vm107 = vcmp.lt.f32.partialorder %v106, 0.0004427343
    %v108 = vsel %vm107, %v105, %v102
    %v109 = vsub.f32 %v95, %v108
    %v110 = vmin.f32 %v94, 0.0
    %v111 = vand.u32 2147483647, %v94
    %v112 = vsub.f32 0.0, %v111
    %v113 = vmul.f32 %v112, 1.442695
    %v114 = vpow.pop %v113
    %v115 = vadd.f32 %v114, 1.0
    %v116 = vlog2.pop %v115
    %v117 = vmul.f32 %v116, 0.6931472
    %v118 = vmul.f32 -0.5, %v114
    %v119 = vadd.f32 %v118, 1.0
    %v120 = vmul.f32 %v119, %v114
    %v121 = vand.u32 2147483647, %v114
    %vm122 = vcmp.lt.f32.partialorder %v121, 0.0004427343
    %v123 = vsel %vm122, %v120, %v117
    %v124 = vsub.f32 %v110, %v123
    %v125 = vadd.f32 %v109, %v124
    %126 = vst [vmem:[#allocation8] sm:$0x1] %v125
    // Predicated region
    $region26: #{tpu_custom_call.1} parent=1 // pred_check
      _
    $region27: #{tpu_custom_call.1} parent=1 // pred_check_branch
      %128 = sbr.rel (0) target = $region29
    $region28: #{tpu_custom_call.1} parent=1 // pred_region
      %s130 = ssub.s32 16, 16
      %131 = vsyncadd [#allocation4], %s130
      %s133 = sshll.u32 [#allocation8], 4
      %s134 = int_to_ptr.vmem [resolvable:$true] %s133
      %136 = dma.vmem_to_hbm [thread:$0]  %s134, 16, %s3, [#allocation4]
    $region29: #{tpu_custom_call.1} parent=1 // pred_fallthru
      _
    // Predicated region
    $region30: #{tpu_custom_call.1} parent=1 // pred_check
      _
    $region31: #{tpu_custom_call.1} parent=1 // pred_check_branch
      %138 = sbr.rel (0) target = $region33
    $region32: #{tpu_custom_call.1} parent=1 // pred_region
      %139 = dma.done [#allocation4], 16
    $region33: #{tpu_custom_call.1} parent=1 // pred_fallthru
      _
    %140 = vsyncpa [#allocation3], 1
    %141 = vsyncpa [#allocation6], 1
    %142 = vsyncpa [#allocation4], 1

</llo_original>
